<compile_context>
chip_gen: v7x
topology: tpu7x:2x2x1
jax: 0.10.0
libtpu: 0.0.40
codegen_flags: <defaults>
</compile_context>

<pallas_src>
import functools
import math

import jax
import jax.numpy as jnp
from jax.experimental import pallas as pl
from jax.experimental.pallas import tpu as pltpu


_LANE_COLS = 1024   # 8 * 128 -> lane-dense, unmasked vector stores
_ROW_BLOCK = 512    # 512*1024*4B = 2 MiB/block; 2x in + 2x out buffers ~ 8 MiB (fits v7x)


# ----------------------------------------------------------------------------
# Lane-dense layout plumbing (wrapper-side reshapes only, no extra compute).
# ----------------------------------------------------------------------------
def _to_lane_dense_2d(x, row_block):
    total = x.size
    cols = _LANE_COLS
    rows = max(1, -(-total // cols))
    block_rows = rows if rows <= row_block else row_block  # row_block must be a multiple of 8
    grid = (-(-rows // block_rows),)
    flat = x.reshape(-1)
    pad = rows * cols - total
    if pad:
        flat = jnp.pad(flat, (0, pad))
    return flat.reshape(rows, cols), (total, rows, cols, block_rows, grid)


def _from_lane_dense_2d(out2d, total, shape):
    flat = out2d.reshape(-1)
    if flat.shape[0] != total:
        flat = flat[:total]
    return flat.reshape(shape)


# ----------------------------------------------------------------------------
# Generic Lambda: o = lambd(x) for an elementwise, JAX-traceable lambd.
# ----------------------------------------------------------------------------
def _lambda_kernel(x_ref, o_ref, *, lambd):
    o_ref[...] = lambd(x_ref[...]).astype(o_ref.dtype)


def lambda_forward(x, lambd, *, row_block=_ROW_BLOCK):
    x2d, (total, rows, cols, block_rows, grid) = _to_lane_dense_2d(x, row_block)
    out2d = pl.pallas_call(
        functools.partial(_lambda_kernel, lambd=lambd),
        out_shape=jax.ShapeDtypeStruct((rows, cols), x.dtype),
        grid=grid,
        in_specs=[pl.BlockSpec((block_rows, cols), lambda i: (i, 0))],
        out_specs=pl.BlockSpec((block_rows, cols), lambda i: (i, 0)),
        compiler_params=pltpu.CompilerParams(dimension_semantics=("parallel",)),
    )(x2d)
    return _from_lane_dense_2d(out2d, total, x.shape)


class Lambda:
    """Pallas analog of the PyTorch Lambda module (elementwise lambds)."""
    # TODO(synk): non-elementwise lambds (view/reshape/slice/permute) are layout
    # ops with no single generic Pallas kernel; they stay at the JAX level.

    def __init__(self, lambd):
        self.lambd = lambd

    def __call__(self, x):
        return lambda_forward(x, self.lambd)


# ----------------------------------------------------------------------------
# Concrete lambd: relative Gaussian noise, out = x * (1 + sigma * N(0, 1)).
# Noise generated in-kernel with a stateless per-element hash (VPU-only ints)
# + Box-Muller, keyed by (seed, global element index) so tiles are i.i.d.
# ----------------------------------------------------------------------------
def _hash_u32(v):
    # lowbias32-style avalanche mix (uint32, wraps).
    v = v ^ (v >> jnp.uint32(16))
    v = v * jnp.uint32(0x7FEB352D)
    v = v ^ (v >> jnp.uint32(15))
    v = v * jnp.uint32(0x846CA68B)
    v = v ^ (v >> jnp.uint32(16))
    return v


def _gaussian_noise_kernel(seed_ref, x_ref, o_ref, *, sigma, block_rows):
    i = pl.program_id(0)
    x = x_ref[...]
    xf = x.astype(jnp.float32)          # cast fused in-kernel (native dtype in HBM)
    r, c = x.shape

    # Globally-unique per-element counter (unique across tiles via program_id).
    row = jax.lax.broadcasted_iota(jnp.int32, (r, c), 0).astype(jnp.uint32)
    col = jax.lax.broadcasted_iota(jnp.int32, (r, c), 1).astype(jnp.uint32)
    row_g = jnp.uint32(i * block_rows) + row
    ctr = row_g * jnp.uint32(c) + col

    seed = jnp.uint32(seed_ref[0])
    k0 = ctr * jnp.uint32(0x9E3779B9) + seed
    bits1 = _hash_u32(k0)
    bits2 = _hash_u32(k0 ^ jnp.uint32(0xBF58476D))

    # 24-bit uniforms; u1 in (0, 1], u2 in [0, 1).
    inv24 = jnp.float32(1.0 / 16777216.0)
    u1 = (bits1 >> jnp.uint32(8)).astype(jnp.int32).astype(jnp.float32) * inv24 \
        + jnp.float32(0.5 / 16777216.0)
    u2 = (bits2 >> jnp.uint32(8)).astype(jnp.int32).astype(jnp.float32) * inv24

    # Box-Muller -> standard normal (|noise| <= ~5.9 given the u1 floor).
    # TODO(synk): if a bundle dump shows the single EUP slot saturating at full
    # HBM rate (v7x), switch to a sum-of-uniforms VPU-only approximation.
    noise = jnp.sqrt(-2.0 * jnp.log(u1)) * jnp.cos(jnp.float32(2.0 * math.pi) * u2)

    o_ref[...] = (xf * (jnp.float32(1.0) + jnp.float32(sigma) * noise)).astype(o_ref.dtype)


def gaussian_noise(x, seed, *, sigma=0.1, is_relative_detach=True, training=True,
                   row_block=_ROW_BLOCK):
    """Lambda wrapping the relative-Gaussian-noise regularizer."""
    del is_relative_detach  # detach only changes gradients; forward value identical
    if (not training) or sigma == 0.0:
        return x

    x2d, (total, rows, cols, block_rows, grid) = _to_lane_dense_2d(x, row_block)
    seed_arr = jnp.asarray([seed], dtype=jnp.int32)

    out2d = pl.pallas_call(
        functools.partial(_gaussian_noise_kernel, sigma=float(sigma), block_rows=block_rows),
        out_shape=jax.ShapeDtypeStruct((rows, cols), x.dtype),
        grid_spec=pltpu.PrefetchScalarGridSpec(
            num_scalar_prefetch=1,
            grid=grid,
            in_specs=[pl.BlockSpec((block_rows, cols), lambda i, seed_ref: (i, 0))],
            out_specs=pl.BlockSpec((block_rows, cols), lambda i, seed_ref: (i, 0)),
        ),
        compiler_params=pltpu.CompilerParams(dimension_semantics=("parallel",)),
    )(seed_arr, x2d)

    return _from_lane_dense_2d(out2d, total, x.shape)


# ----------------------------------------------------------------------------
if __name__ == "__main__":
    key = jax.random.PRNGKey(0)
    x = jax.random.normal(key, (2, 4, 16, 16), dtype=jnp.float32)

    # 1) Lambda with a deterministic elementwise function.
    lambd = lambda t: jnp.tanh(t) * 0.5 + 0.1 * t
    layer = Lambda(lambd)
    out = jax.block_until_ready(layer(x))
    assert out.shape == x.shape and out.dtype == x.dtype
    assert bool(jnp.allclose(out, lambd(x), atol=1e-5, rtol=1e-5))

    # 2) Lambda wrapping the relative-Gaussian-noise regularizer.
    sigma = 0.1
    noisy = jax.block_until_ready(gaussian_noise(x, seed=1234, sigma=sigma, training=True))
    assert noisy.shape == x.shape and noisy.dtype == x.dtype
    diff = noisy - x                                  # = x * sigma * noise, |noise| <= ~5.9
    assert bool(jnp.all(jnp.abs(diff) <= 8.0 * sigma * jnp.abs(x) + 1e-6)), "noise not relative"
    assert bool(jnp.any(jnp.abs(diff) > 0)), "no noise was added"

    # Eval mode / sigma == 0: identity.
    out_eval = jax.block_until_ready(gaussian_noise(x, seed=1234, sigma=sigma, training=False))
    assert bool(jnp.all(out_eval == x))

    # 3) Multi-tile path: per-tile unique noise, roughly N(0, 1).
    x2 = jnp.ones((2, 8, 32, 32), dtype=jnp.float32)  # 16384 elems -> 16 rows x 1024 lanes
    noisy2 = jax.block_until_ready(gaussian_noise(x2, seed=7, sigma=sigma, row_block=8))
    noise2 = ((noisy2 - x2) / sigma).reshape(-1)
    tile0, tile1 = noise2[:8192], noise2[8192:]
    assert not bool(jnp.allclose(tile0, tile1)), "tiles drew identical noise"
    assert bool(jnp.abs(jnp.mean(noise2)) < 0.1)
    assert bool(jnp.abs(jnp.std(noise2) - 1.0) < 0.15)

    # 4) Sub-f32 input stays in its native dtype end-to-end (cast fused in-kernel).
    xb = x.astype(jnp.bfloat16)
    noisy_b = jax.block_until_ready(gaussian_noise(xb, seed=3, sigma=sigma))
    assert noisy_b.dtype == jnp.bfloat16 and noisy_b.shape == xb.shape
    assert bool(jnp.all(jnp.isfinite(noisy_b.astype(jnp.float32))))

    print("KERNEL_OK")
</pallas_src>

<mosaic_0001>
module attributes {stable_mosaic.version = 11 : i64} {
  func.func @_lambda_kernel(%arg0: i32, %arg1: memref<2x1024xf32, #tpu.memory_space<vmem>>, %arg2: memref<2x1024xf32, #tpu.memory_space<vmem>>) attributes {dimension_semantics = [#tpu.dimension_semantics<parallel>], iteration_bounds = array<i64: 1>, scalar_prefetch = 0 : i64, scratch_operands = 0 : i64, tpu.core_type = #tpu.core_type<tc>, window_params = [{transform_indices = @transform_0, window_bounds = array<i64: 2, 1024>}, {transform_indices = @transform_1, window_bounds = array<i64: 2, 1024>}]} {
    %c0 = arith.constant 0 : index
    %c0_0 = arith.constant 0 : index
    %0 = vector.load %arg1[%c0, %c0_0] : memref<2x1024xf32, #tpu.memory_space<vmem>>, vector<2x1024xf32>
    %1 = math.tanh %0 : vector<2x1024xf32>
    %cst = arith.constant 5.000000e-01 : f32
    %2 = vector.broadcast %cst : f32 to vector<2x1024xf32>
    %3 = arith.mulf %1, %2 : vector<2x1024xf32>
    %cst_1 = arith.constant 1.000000e-01 : f32
    %4 = vector.broadcast %cst_1 : f32 to vector<2x1024xf32>
    %5 = arith.mulf %4, %0 : vector<2x1024xf32>
    %6 = arith.addf %3, %5 : vector<2x1024xf32>
    %c0_2 = arith.constant 0 : index
    %c0_3 = arith.constant 0 : index
    %7 = vector.load %arg2[%c0_2, %c0_3] : memref<2x1024xf32, #tpu.memory_space<vmem>>, vector<2x1024xf32>
    tpu.vector_store %arg2[%c0_2, %c0_3], %6 {strides = array<i32>} : memref<2x1024xf32, #tpu.memory_space<vmem>>, vector<2x1024xf32>,
    return
  }
  func.func @transform_0(%arg0: i32) -> (i32, i32) {
    %c0_i32 = arith.constant 0 : i32
    %c0_i32_0 = arith.constant 0 : i32
    return %arg0, %c0_i32 : i32, i32
  }
  func.func @transform_1(%arg0: i32) -> (i32, i32) {
    %c0_i32 = arith.constant 0 : i32
    %c0_i32_0 = arith.constant 0 : i32
    return %arg0, %c0_i32 : i32, i32
  }
}

</mosaic_0001>

<llo_original>
// kernel: tpu_custom_call.1
$region0: #{tpu_custom_call.1}
  #allocation0 [shape = 'u32[]', space=smem, size = 0x4, offset = 0x4, fixed_abs, tag = 'smem constant byte address 0x4 - core index']
  #allocation1 [shape = 'u32[144,128]{1,0:T(1,128)}', space=vmem, size = 0x12000, scoped, tag = 'internal scratch']
  %s0 = inlined_call_operand.hbm [shape: f32[2,1024], index: 0, kind: input, shape index: {}]
  %s1 = inlined_call_operand.hbm [shape: f32[2,1024], index: 1, kind: output, shape index: {}]
  %s2 = sld [smem:[#allocation0]]
  $region18: #{tpu_custom_call.1} parent=0
    _
  %s4 = ssub.s32 1, %s2
  %s5 = scalar_select 0, %s4, %s2
  $region1: #{tpu_custom_call.1} parent=0
    #allocation2 [shape = 'u8[8192]{0}', space=vmem, size = 0x2000, scoped, tag = 'input window, operand 0, single buffered']
    #allocation3 [shape = 's32[1]{0}', space=sflag, size = 0x4, scoped, tag = 'scoped memory for tpu_custom_call.1']
    #allocation4 [shape = 's32[1]{0}', space=sflag, size = 0x4, scoped, tag = 'scoped memory for tpu_custom_call.1']
    #allocation5 [shape = 'u8[8192]{0}', space=vmem, size = 0x2000, scoped, tag = 'output window, operand 0, single buffered']
    %6 = vsyncpa [#allocation3], 0
    %7 = vsyncpa [#allocation4], 0
    // Predicated region
    $region2: #{tpu_custom_call.1} parent=1 // pred_check
      _
    $region3: #{tpu_custom_call.1} parent=1 // pred_check_branch
      %9 = sbr.rel (0) target = $region5
    $region4: #{tpu_custom_call.1} parent=1 // pred_region
      %s11 = ssub.s32 256, 256
      %12 = vsyncadd [#allocation3], %s11
      %s14 = sshll.u32 [#allocation2], 4
      %s15 = int_to_ptr.vmem [resolvable:$true] %s14
      %17 = dma.hbm_to_vmem [thread:$0]  %s0, 256, %s15, [#allocation3]
    $region5: #{tpu_custom_call.1} parent=1 // pred_fallthru
      _
    // Predicated region
    $region6: #{tpu_custom_call.1} parent=1 // pred_check
      _
    $region7: #{tpu_custom_call.1} parent=1 // pred_check_branch
      %19 = sbr.rel (0) target = $region9
    $region8: #{tpu_custom_call.1} parent=1 // pred_region
      %20 = dma.done [#allocation3], 256
    $region9: #{tpu_custom_call.1} parent=1 // pred_fallthru
      _
    %v21 = vld [vmem:[#allocation2] sm:$0xff]
    %v22 = vld [vmem:[#allocation2 + $0x8] sm:$0xff]
    %v23 = vtanh.pop %v21
    %v24 = vtanh.pop %v22
    %v25 = vmul.f32 %v23, 0.5
    %v26 = vmul.f32 %v24, 0.5
    %v27 = vmul.f32 %v21, 0.1
    %v28 = vmul.f32 %v22, 0.1
    %v29 = vadd.f32 %v25, %v27
    %v30 = vadd.f32 %v26, %v28
    %31 = vst [vmem:[#allocation5] sm:$0xff] %v29
    %32 = vst [vmem:[#allocation5 + $0x8] sm:$0xff] %v30
    // Predicated region
    $region10: #{tpu_custom_call.1} parent=1 // pred_check
      _
    $region11: #{tpu_custom_call.1} parent=1 // pred_check_branch
      %34 = sbr.rel (0) target = $region13
    $region12: #{tpu_custom_call.1} parent=1 // pred_region
      %s36 = ssub.s32 256, 256
      %37 = vsyncadd [#allocation4], %s36
      %s39 = sshll.u32 [#allocation5], 4
      %s40 = int_to_ptr.vmem [resolvable:$true] %s39
      %42 = dma.vmem_to_hbm [thread:$0]  %s40, 256, %s1, [#allocation4]
    $region13: #{tpu_custom_call.1} parent=1 // pred_fallthru
      _
    // Predicated region
    $region14: #{tpu_custom_call.1} parent=1 // pred_check
      _
    $region15: #{tpu_custom_call.1} parent=1 // pred_check_branch
      %44 = sbr.rel (0) target = $region17
    $region16: #{tpu_custom_call.1} parent=1 // pred_region
      %45 = dma.done [#allocation4], 256
    $region17: #{tpu_custom_call.1} parent=1 // pred_fallthru
      _
    %46 = vsyncpa [#allocation3], 1
    %47 = vsyncpa [#allocation4], 1

</llo_original>
